<compile_context>
chip_gen: v7x
topology: tpu7x:2x2x1
jax: 0.10.0
libtpu: 0.0.40
codegen_flags: <defaults>
</compile_context>

<pallas_src>
import jax
import jax.numpy as jnp
from jax.experimental import pallas as pl
from jax.experimental.pallas import tpu as pltpu


def flattening_forward(x: jax.Array, *, min_copy_bytes: int = 1 << 20) -> jax.Array:
    """Pallas equivalent of torch.flatten(x, 1).

    Returns an array of shape (B, prod(rest)).  For inputs smaller than
    `min_copy_bytes` the result is a free metadata reshape; otherwise the
    result is materialized into a fresh buffer via direct HBM->HBM DMA.
    """
    B = x.shape[0]
    F = 1
    for d in x.shape[1:]:
        F *= d

    # Row-major reshape -> identical element order to torch.flatten(x, 1).
    x2d = jnp.reshape(x, (B, F))

    itemsize = jnp.dtype(x.dtype).itemsize
    nbytes = B * F * itemsize

    # Small-input fast path: the reshape is free; a pallas_call + DMA launch
    # would be pure overhead.
    if nbytes < min_copy_bytes:
        return x2d

    # ---- Choose how to split the copy into concurrent DMAs ----------------
    # Prefer chunking along rows (B) when it divides cleanly into the dtype's
    # packed sublane tile; otherwise chunk along the lane axis (F) in
    # 128-lane-aligned column slabs; otherwise do a single whole-ref DMA.
    sub = max(1, 32 // itemsize)     # min sublane multiple: 8 f32, 16 bf16, 32 i8
    nc = 1
    axis = None                      # None: whole-ref copy, 0: rows, 1: cols
    for cand in (4, 2):
        if B % cand == 0 and (B // cand) % sub == 0:
            nc, axis = cand, 0
            break
    if nc == 1:
        for cand in (4, 2):
            if F % (cand * 128) == 0:
                nc, axis = cand, 1
                break

    rows = B // nc if axis == 0 else B
    cols = F // nc if axis == 1 else F

    def _dma_copy_kernel(x_hbm, o_hbm, sems):
        # Direct HBM -> HBM copy: issue all DMAs, then wait on all of them.
        copies = []
        for i in range(nc):
            if axis == 0:
                src = x_hbm.at[pl.ds(i * rows, rows), :]
                dst = o_hbm.at[pl.ds(i * rows, rows), :]
            elif axis == 1:
                src = x_hbm.at[:, pl.ds(i * cols, cols)]
                dst = o_hbm.at[:, pl.ds(i * cols, cols)]
            else:
                src, dst = x_hbm, o_hbm
            cp = pltpu.make_async_copy(src, dst, sems.at[i])
            cp.start()
            copies.append(cp)
        for cp in copies:
            cp.wait()

    out = pl.pallas_call(
        _dma_copy_kernel,
        out_shape=jax.ShapeDtypeStruct((B, F), x.dtype),
        in_specs=[pl.BlockSpec(memory_space=pl.ANY)],    # raw HBM ref, no auto-DMA
        out_specs=pl.BlockSpec(memory_space=pl.ANY),     # raw HBM ref, DMA'd by kernel
        scratch_shapes=[pltpu.SemaphoreType.DMA((nc,))],
        cost_estimate=pl.CostEstimate(
            flops=0,
            transcendentals=0,
            bytes_accessed=2 * nbytes,                   # read + write, mem-bound
        ),
    )(x2d)

    return out


if __name__ == "__main__":
    key = jax.random.PRNGKey(0)
    k1, k2, k3, k4 = jax.random.split(key, 4)

    # Small NCHW-style inputs consistent with the module's expected use.
    tests = [
        # (shape, dtype) -> exercises F-axis chunking (F = 1024, 4 DMAs)
        ((2, 4, 16, 16), jnp.float32),
        # non-128-multiple flattened size -> single whole-ref DMA
        ((2, 3, 5, 7), jnp.float32),
        # bf16 -> dtype-aware tile alignment, F-axis chunking
        ((4, 8, 8, 32), jnp.bfloat16),
        # larger batch -> row-axis chunking (B = 32, 4 DMAs of 8 rows)
        ((32, 4, 16, 16), jnp.float32),
    ]

    for kk, (shape, dtype) in zip((k1, k2, k3, k4), tests):
        x = jax.random.normal(kk, shape, dtype=jnp.float32).astype(dtype)

        # Force the Pallas DMA-copy path (min_copy_bytes=0) so the kernel runs.
        y = flattening_forward(x, min_copy_bytes=0)
        y = jax.block_until_ready(y)

        # Reference: plain JAX flatten (same semantics as torch.flatten(x, 1)).
        y_ref = jnp.reshape(x, (x.shape[0], -1))

        assert y.shape == y_ref.shape, (y.shape, y_ref.shape)
        assert y.dtype == x.dtype, (y.dtype, x.dtype)
        assert jnp.array_equal(y, y_ref), f"mismatch vs reference flatten for {shape}"

        # Default (small-input) fast path: pure metadata reshape.
        y_fast = jax.block_until_ready(flattening_forward(x))
        assert jnp.array_equal(y_fast, y_ref), f"fast-path mismatch for {shape}"

    print("KERNEL_OK")
</pallas_src>

<mosaic_0001>
module attributes {stable_mosaic.version = 11 : i64} {
  func.func @_dma_copy_kernel(%arg0: memref<2x1024xf32, #tpu.memory_space<any>>, %arg1: memref<2x1024xf32, #tpu.memory_space<any>>, %arg2: memref<4x!tpu.dma_semaphore, #tpu.memory_space<semaphore_mem>>) attributes {dimension_semantics = [], scalar_prefetch = 0 : i64, scratch_operands = 1 : i64, tpu.core_type = #tpu.core_type<tc>} {
    %c0_i32 = arith.constant 0 : i32
    %c0_i32_0 = arith.constant 0 : i32
    %c0_i32_1 = arith.constant 0 : i32
    %0 = tpu.memref_slice %arg0[%c0_i32_0, %c0_i32_1] : memref<2x1024xf32, #tpu.memory_space<any>> -> memref<2x256xf32, #tpu.memory_space<any>>
    %c0_i32_2 = arith.constant 0 : i32
    %c0_i32_3 = arith.constant 0 : i32
    %1 = tpu.memref_slice %arg1[%c0_i32_2, %c0_i32_3] : memref<2x1024xf32, #tpu.memory_space<any>> -> memref<2x256xf32, #tpu.memory_space<any>>
    %2 = tpu.memref_slice %arg2[%c0_i32] : memref<4x!tpu.dma_semaphore, #tpu.memory_space<semaphore_mem>> -> memref<1x!tpu.dma_semaphore, #tpu.memory_space<semaphore_mem>>
    %3 = tpu.memref_squeeze %2 : memref<1x!tpu.dma_semaphore, #tpu.memory_space<semaphore_mem>> -> memref<!tpu.dma_semaphore, #tpu.memory_space<semaphore_mem>>
    tpu.enqueue_dma source(%0 : memref<2x256xf32, #tpu.memory_space<any>>) target(%1 : memref<2x256xf32, #tpu.memory_space<any>>) target_semaphore(%3 : memref<!tpu.dma_semaphore, #tpu.memory_space<semaphore_mem>>)
    %c1_i32 = arith.constant 1 : i32
    %c0_i32_4 = arith.constant 0 : i32
    %c256_i32 = arith.constant 256 : i32
    %4 = tpu.memref_slice %arg0[%c0_i32_4, %c256_i32] : memref<2x1024xf32, #tpu.memory_space<any>> -> memref<2x256xf32, #tpu.memory_space<any>>
    %c0_i32_5 = arith.constant 0 : i32
    %c256_i32_6 = arith.constant 256 : i32
    %5 = tpu.memref_slice %arg1[%c0_i32_5, %c256_i32_6] : memref<2x1024xf32, #tpu.memory_space<any>> -> memref<2x256xf32, #tpu.memory_space<any>>
    %6 = tpu.memref_slice %arg2[%c1_i32] : memref<4x!tpu.dma_semaphore, #tpu.memory_space<semaphore_mem>> -> memref<1x!tpu.dma_semaphore, #tpu.memory_space<semaphore_mem>>
    %7 = tpu.memref_squeeze %6 : memref<1x!tpu.dma_semaphore, #tpu.memory_space<semaphore_mem>> -> memref<!tpu.dma_semaphore, #tpu.memory_space<semaphore_mem>>
    tpu.enqueue_dma source(%4 : memref<2x256xf32, #tpu.memory_space<any>>) target(%5 : memref<2x256xf32, #tpu.memory_space<any>>) target_semaphore(%7 : memref<!tpu.dma_semaphore, #tpu.memory_space<semaphore_mem>>)
    %c2_i32 = arith.constant 2 : i32
    %c0_i32_7 = arith.constant 0 : i32
    %c512_i32 = arith.constant 512 : i32
    %8 = tpu.memref_slice %arg0[%c0_i32_7, %c512_i32] : memref<2x1024xf32, #tpu.memory_space<any>> -> memref<2x256xf32, #tpu.memory_space<any>>
    %c0_i32_8 = arith.constant 0 : i32
    %c512_i32_9 = arith.constant 512 : i32
    %9 = tpu.memref_slice %arg1[%c0_i32_8, %c512_i32_9] : memref<2x1024xf32, #tpu.memory_space<any>> -> memref<2x256xf32, #tpu.memory_space<any>>
    %10 = tpu.memref_slice %arg2[%c2_i32] : memref<4x!tpu.dma_semaphore, #tpu.memory_space<semaphore_mem>> -> memref<1x!tpu.dma_semaphore, #tpu.memory_space<semaphore_mem>>
    %11 = tpu.memref_squeeze %10 : memref<1x!tpu.dma_semaphore, #tpu.memory_space<semaphore_mem>> -> memref<!tpu.dma_semaphore, #tpu.memory_space<semaphore_mem>>
    tpu.enqueue_dma source(%8 : memref<2x256xf32, #tpu.memory_space<any>>) target(%9 : memref<2x256xf32, #tpu.memory_space<any>>) target_semaphore(%11 : memref<!tpu.dma_semaphore, #tpu.memory_space<semaphore_mem>>)
    %c3_i32 = arith.constant 3 : i32
    %c0_i32_10 = arith.constant 0 : i32
    %c768_i32 = arith.constant 768 : i32
    %12 = tpu.memref_slice %arg0[%c0_i32_10, %c768_i32] : memref<2x1024xf32, #tpu.memory_space<any>> -> memref<2x256xf32, #tpu.memory_space<any>>
    %c0_i32_11 = arith.constant 0 : i32
    %c768_i32_12 = arith.constant 768 : i32
    %13 = tpu.memref_slice %arg1[%c0_i32_11, %c768_i32_12] : memref<2x1024xf32, #tpu.memory_space<any>> -> memref<2x256xf32, #tpu.memory_space<any>>
    %14 = tpu.memref_slice %arg2[%c3_i32] : memref<4x!tpu.dma_semaphore, #tpu.memory_space<semaphore_mem>> -> memref<1x!tpu.dma_semaphore, #tpu.memory_space<semaphore_mem>>
    %15 = tpu.memref_squeeze %14 : memref<1x!tpu.dma_semaphore, #tpu.memory_space<semaphore_mem>> -> memref<!tpu.dma_semaphore, #tpu.memory_space<semaphore_mem>>
    tpu.enqueue_dma source(%12 : memref<2x256xf32, #tpu.memory_space<any>>) target(%13 : memref<2x256xf32, #tpu.memory_space<any>>) target_semaphore(%15 : memref<!tpu.dma_semaphore, #tpu.memory_space<semaphore_mem>>)
    %c0_i32_13 = arith.constant 0 : i32
    %c0_i32_14 = arith.constant 0 : i32
    %c0_i32_15 = arith.constant 0 : i32
    %16 = tpu.memref_slice %arg0[%c0_i32_14, %c0_i32_15] : memref<2x1024xf32, #tpu.memory_space<any>> -> memref<2x256xf32, #tpu.memory_space<any>>
    %c0_i32_16 = arith.constant 0 : i32
    %c0_i32_17 = arith.constant 0 : i32
    %17 = tpu.memref_slice %arg1[%c0_i32_16, %c0_i32_17] : memref<2x1024xf32, #tpu.memory_space<any>> -> memref<2x256xf32, #tpu.memory_space<any>>
    %18 = tpu.memref_slice %arg2[%c0_i32_13] : memref<4x!tpu.dma_semaphore, #tpu.memory_space<semaphore_mem>> -> memref<1x!tpu.dma_semaphore, #tpu.memory_space<semaphore_mem>>
    %19 = tpu.memref_squeeze %18 : memref<1x!tpu.dma_semaphore, #tpu.memory_space<semaphore_mem>> -> memref<!tpu.dma_semaphore, #tpu.memory_space<semaphore_mem>>
    tpu.wait_dma2 semaphore(%19 : memref<!tpu.dma_semaphore, #tpu.memory_space<semaphore_mem>>) src(%16 : memref<2x256xf32, #tpu.memory_space<any>>) dst(%17 : memref<2x256xf32, #tpu.memory_space<any>>)
    %c1_i32_18 = arith.constant 1 : i32
    %c0_i32_19 = arith.constant 0 : i32
    %c256_i32_20 = arith.constant 256 : i32
    %20 = tpu.memref_slice %arg0[%c0_i32_19, %c256_i32_20] : memref<2x1024xf32, #tpu.memory_space<any>> -> memref<2x256xf32, #tpu.memory_space<any>>
    %c0_i32_21 = arith.constant 0 : i32
    %c256_i32_22 = arith.constant 256 : i32
    %21 = tpu.memref_slice %arg1[%c0_i32_21, %c256_i32_22] : memref<2x1024xf32, #tpu.memory_space<any>> -> memref<2x256xf32, #tpu.memory_space<any>>
    %22 = tpu.memref_slice %arg2[%c1_i32_18] : memref<4x!tpu.dma_semaphore, #tpu.memory_space<semaphore_mem>> -> memref<1x!tpu.dma_semaphore, #tpu.memory_space<semaphore_mem>>
    %23 = tpu.memref_squeeze %22 : memref<1x!tpu.dma_semaphore, #tpu.memory_space<semaphore_mem>> -> memref<!tpu.dma_semaphore, #tpu.memory_space<semaphore_mem>>
    tpu.wait_dma2 semaphore(%23 : memref<!tpu.dma_semaphore, #tpu.memory_space<semaphore_mem>>) src(%20 : memref<2x256xf32, #tpu.memory_space<any>>) dst(%21 : memref<2x256xf32, #tpu.memory_space<any>>)
    %c2_i32_23 = arith.constant 2 : i32
    %c0_i32_24 = arith.constant 0 : i32
    %c512_i32_25 = arith.constant 512 : i32
    %24 = tpu.memref_slice %arg0[%c0_i32_24, %c512_i32_25] : memref<2x1024xf32, #tpu.memory_space<any>> -> memref<2x256xf32, #tpu.memory_space<any>>
    %c0_i32_26 = arith.constant 0 : i32
    %c512_i32_27 = arith.constant 512 : i32
    %25 = tpu.memref_slice %arg1[%c0_i32_26, %c512_i32_27] : memref<2x1024xf32, #tpu.memory_space<any>> -> memref<2x256xf32, #tpu.memory_space<any>>
    %26 = tpu.memref_slice %arg2[%c2_i32_23] : memref<4x!tpu.dma_semaphore, #tpu.memory_space<semaphore_mem>> -> memref<1x!tpu.dma_semaphore, #tpu.memory_space<semaphore_mem>>
    %27 = tpu.memref_squeeze %26 : memref<1x!tpu.dma_semaphore, #tpu.memory_space<semaphore_mem>> -> memref<!tpu.dma_semaphore, #tpu.memory_space<semaphore_mem>>
    tpu.wait_dma2 semaphore(%27 : memref<!tpu.dma_semaphore, #tpu.memory_space<semaphore_mem>>) src(%24 : memref<2x256xf32, #tpu.memory_space<any>>) dst(%25 : memref<2x256xf32, #tpu.memory_space<any>>)
    %c3_i32_28 = arith.constant 3 : i32
    %c0_i32_29 = arith.constant 0 : i32
    %c768_i32_30 = arith.constant 768 : i32
    %28 = tpu.memref_slice %arg0[%c0_i32_29, %c768_i32_30] : memref<2x1024xf32, #tpu.memory_space<any>> -> memref<2x256xf32, #tpu.memory_space<any>>
    %c0_i32_31 = arith.constant 0 : i32
    %c768_i32_32 = arith.constant 768 : i32
    %29 = tpu.memref_slice %arg1[%c0_i32_31, %c768_i32_32] : memref<2x1024xf32, #tpu.memory_space<any>> -> memref<2x256xf32, #tpu.memory_space<any>>
    %30 = tpu.memref_slice %arg2[%c3_i32_28] : memref<4x!tpu.dma_semaphore, #tpu.memory_space<semaphore_mem>> -> memref<1x!tpu.dma_semaphore, #tpu.memory_space<semaphore_mem>>
    %31 = tpu.memref_squeeze %30 : memref<1x!tpu.dma_semaphore, #tpu.memory_space<semaphore_mem>> -> memref<!tpu.dma_semaphore, #tpu.memory_space<semaphore_mem>>
    tpu.wait_dma2 semaphore(%31 : memref<!tpu.dma_semaphore, #tpu.memory_space<semaphore_mem>>) src(%28 : memref<2x256xf32, #tpu.memory_space<any>>) dst(%29 : memref<2x256xf32, #tpu.memory_space<any>>)
    return
  }
}

</mosaic_0001>

<llo_original>
// kernel: tpu_custom_call.1
$region0: #{tpu_custom_call.1}
  #allocation0 [shape = 'u32[]', space=smem, size = 0x4, offset = 0x4, fixed_abs, tag = 'smem constant byte address 0x4 - core index']
  #allocation1 [shape = 'u32[144,128]{1,0:T(1,128)}', space=vmem, size = 0x12000, scoped, tag = 'internal scratch']
  #allocation2 [shape = 's32[4]{0}', space=sflag, size = 0x10, scoped, tag = 'scratch operand']
  #allocation3 [shape = 's32[]', space=sflag, size = 0x4, offset = 0, fixed_abs, tag = 'sflag constant byte address 0x0 - dummy sync flag']
  #allocation4 [shape = 'u32[0]{0}', space=smem, size = 0, offset = 0, fixed_abs, tag = 'smem constant byte address 0x0 - null']
  #allocation5 [shape = 's32[]', space=sflag, size = 0x4, offset = 0, fixed_abs, tag = 'sflag constant byte address 0x0 - dummy sync flag']
  #allocation6 [shape = 'u32[0]{0}', space=smem, size = 0, offset = 0, fixed_abs, tag = 'smem constant byte address 0x0 - null']
  #allocation7 [shape = 's32[]', space=sflag, size = 0x4, offset = 0, fixed_abs, tag = 'sflag constant byte address 0x0 - dummy sync flag']
  #allocation8 [shape = 'u32[0]{0}', space=smem, size = 0, offset = 0, fixed_abs, tag = 'smem constant byte address 0x0 - null']
  #allocation9 [shape = 's32[]', space=sflag, size = 0x4, offset = 0, fixed_abs, tag = 'sflag constant byte address 0x0 - dummy sync flag']
  #allocation10 [shape = 'u32[0]{0}', space=smem, size = 0, offset = 0, fixed_abs, tag = 'smem constant byte address 0x0 - null']
  %s0 = inlined_call_operand.hbm [shape: f32[2,1024], index: 0, kind: input, shape index: {}]
  %s1 = inlined_call_operand.hbm [shape: f32[2,1024], index: 1, kind: output, shape index: {}]
  %s2 = sld [smem:[#allocation0]]
  $region2: #{tpu_custom_call.1} parent=0
    _
  %s4 = ssub.s32 1, %s2
  %s5 = scalar_select 0, %s4, %s2
  %s7 = sshll.u32 1, 14
  %s8 = sxor.u32 4294967295, %s7
  %s11 = sshll.u32 3, 24
  %s12 = sxor.u32 4294967295, %s11
  %s13 = sand.u32 0, %s12
  %s15 = sor.u32 %s13, 0
  %18 = dma.general %s0, 64, %s1, [#allocation2], [#allocation3], [#allocation4], %s15, 0
  %s19 = scalar_lea.hbm %s0, 64
  %s20 = scalar_lea.hbm %s1, 64
  %s21 = scalar_lea.sflag [#allocation2], 1
  %s23 = sshll.u32 1, 14
  %s24 = sxor.u32 4294967295, %s23
  %s27 = sshll.u32 3, 24
  %s28 = sxor.u32 4294967295, %s27
  %s29 = sand.u32 0, %s28
  %s31 = sor.u32 %s29, 0
  %34 = dma.general %s19, 64, %s20, %s21, [#allocation5], [#allocation6], %s31, 0
  %s35 = scalar_lea.hbm %s0, 128
  %s36 = scalar_lea.hbm %s1, 128
  %s37 = scalar_lea.sflag [#allocation2], 2
  %s39 = sshll.u32 1, 14
  %s40 = sxor.u32 4294967295, %s39
  %s43 = sshll.u32 3, 24
  %s44 = sxor.u32 4294967295, %s43
  %s45 = sand.u32 0, %s44
  %s47 = sor.u32 %s45, 0
  %50 = dma.general %s35, 64, %s36, %s37, [#allocation7], [#allocation8], %s47, 0
  %s51 = scalar_lea.hbm %s0, 192
  %s52 = scalar_lea.hbm %s1, 192
  %s53 = scalar_lea.sflag [#allocation2], 3
  %s55 = sshll.u32 1, 14
  %s56 = sxor.u32 4294967295, %s55
  %s59 = sshll.u32 3, 24
  %s60 = sxor.u32 4294967295, %s59
  %s61 = sand.u32 0, %s60
  %s63 = sor.u32 %s61, 0
  %66 = dma.general %s51, 64, %s52, %s53, [#allocation9], [#allocation10], %s63, 0
  %s67 = smul.u32 2, 1
  %s68 = smul.u32 %s67, 2
  %s69 = sshll.u32 %s68, 4
  %70 = dma.done [#allocation2], %s69
  %s71 = sshll.u32 %s68, 4
  %72 = dma.done %s21, %s71
  %s73 = sshll.u32 %s68, 4
  %74 = dma.done %s37, %s73
  %s75 = sshll.u32 %s68, 4
  %76 = dma.done %s53, %s75
  %77 = vsyncmov [#allocation2]
  %s78 = vpop.sfrf %77
  %p79 = scmp.eq.s32.totalorder %s78, 0
  %p80 = pneg %p79
  %82 = shalt.err (%p80)
  %s83 = scalar_lea.sflag [#allocation2], 1
  %84 = vsyncmov %s83
  %s85 = vpop.sfrf %84
  %p86 = scmp.eq.s32.totalorder %s85, 0
  %p87 = pneg %p86
  %89 = shalt.err (%p87)
  %s90 = scalar_lea.sflag [#allocation2], 2
  %91 = vsyncmov %s90
  %s92 = vpop.sfrf %91
  %p93 = scmp.eq.s32.totalorder %s92, 0
  %p94 = pneg %p93
  %96 = shalt.err (%p94)
  %s97 = scalar_lea.sflag [#allocation2], 3
  %98 = vsyncmov %s97
  %s99 = vpop.sfrf %98
  %p100 = scmp.eq.s32.totalorder %s99, 0
  %p101 = pneg %p100
  %103 = shalt.err (%p101)

</llo_original>
